<compile_context>
chip_gen: v5e
topology: v5e:2x2
jax: 0.10.0
libtpu: 0.0.40
codegen_flags: <defaults>
</compile_context>

<pallas_src>
import jax
import jax.numpy as jnp
from jax.experimental import pallas as pl
from jax.experimental.pallas import tpu as pltpu


# ---------------------------------------------------------------------------
# Kernels
# ---------------------------------------------------------------------------
def _mlp_tail(h1_pre, w2_ref, b2_ref, w3_ref, b3_ref, out_ref):
    """Sigmoid -> Linear -> Sigmoid -> Linear, writing the output tile."""
    h1 = jax.nn.sigmoid(h1_pre)                                   # EUP path
    h2 = jnp.dot(h1, w2_ref[...], preferred_element_type=jnp.float32)
    h2 = jax.nn.sigmoid(h2 + b2_ref[...])
    out = jnp.dot(h2, w3_ref[...], preferred_element_type=jnp.float32)
    out_ref[...] = (out + b3_ref[...]).astype(out_ref.dtype)


def decoder_kernel_folded_z(x_ref, w1x_ref, b1eff_ref,
                            w2_ref, b2_ref, w3_ref, b3_ref, out_ref):
    """z is shared by all rows: its projection is pre-folded into b1_eff."""
    h1_pre = jnp.dot(x_ref[...], w1x_ref[...],
                     preferred_element_type=jnp.float32) + b1eff_ref[...]
    _mlp_tail(h1_pre, w2_ref, b2_ref, w3_ref, b3_ref, out_ref)


def decoder_kernel_per_row_z(x_ref, z_ref, w1x_ref, w1z_ref, b1_ref,
                             w2_ref, b2_ref, w3_ref, b3_ref, out_ref):
    """z has one row per data point: two small dots replace the concat."""
    h1_pre = (jnp.dot(x_ref[...], w1x_ref[...],
                      preferred_element_type=jnp.float32)
              + jnp.dot(z_ref[...], w1z_ref[...],
                        preferred_element_type=jnp.float32)
              + b1_ref[...])
    _mlp_tail(h1_pre, w2_ref, b2_ref, w3_ref, b3_ref, out_ref)


# ---------------------------------------------------------------------------
# Wrapper
# ---------------------------------------------------------------------------
def decoder_forward(x_pred, z, params, *, row_tile=512):
    """Reproduces Decoder.forward semantics.

    x_pred: (n, d_x); z: (d_z,), (1, d_z), or (n, d_z) (torch.expand semantics).
    params: (w1, b1, w2, b2, w3, b3) with w1 of shape (d_x + d_z, H1).
    Returns (n, output_dim) float32.
    """
    if z.ndim == 1:
        z = z[None, :]
    n, d_x = x_pred.shape
    d_z = z.shape[-1]

    w1, b1, w2, b2, w3, b3 = params
    assert w1.shape[0] == d_x + d_z
    out_dim = w3.shape[-1]

    # Split first-layer weight: concat([x, z]) @ W1 == x @ W1_x + z @ W1_z.
    w1_x = w1[:d_x]                       # (d_x, H1)
    w1_z = w1[d_x:]                       # (d_z, H1)

    assert row_tile % 8 == 0, "row_tile must be a multiple of 8 (sublanes)"
    tile = n if n <= row_tile else row_tile
    grid = (pl.cdiv(n, tile),)

    def resident(shape):
        # Same block every grid step -> stays resident in VMEM.
        return pl.BlockSpec(shape, lambda i: (0, 0))

    x_spec = pl.BlockSpec((tile, d_x), lambda i: (i, 0))
    out_spec = pl.BlockSpec((tile, out_dim), lambda i: (i, 0))
    out_shape = jax.ShapeDtypeStruct((n, out_dim), jnp.float32)
    compiler_params = pltpu.CompilerParams(dimension_semantics=("parallel",))

    if z.shape[0] == 1:
        # Single latent sample: fold z projection into the first bias once.
        b1_eff = b1 + jnp.dot(z.astype(jnp.float32), w1_z)        # (1, H1)
        return pl.pallas_call(
            decoder_kernel_folded_z,
            out_shape=out_shape,
            grid=grid,
            in_specs=[x_spec,
                      resident(w1_x.shape), resident(b1_eff.shape),
                      resident(w2.shape), resident(b2.shape),
                      resident(w3.shape), resident(b3.shape)],
            out_specs=out_spec,
            compiler_params=compiler_params,
        )(x_pred, w1_x, b1_eff, w2, b2, w3, b3)

    # Per-row latent (torch.expand requires num_samples in {1, n}).
    assert z.shape[0] == n, "z leading dim must be 1 or n (expand semantics)"
    z_spec = pl.BlockSpec((tile, d_z), lambda i: (i, 0))
    return pl.pallas_call(
        decoder_kernel_per_row_z,
        out_shape=out_shape,
        grid=grid,
        in_specs=[x_spec, z_spec,
                  resident(w1_x.shape), resident(w1_z.shape), resident(b1.shape),
                  resident(w2.shape), resident(b2.shape),
                  resident(w3.shape), resident(b3.shape)],
        out_specs=out_spec,
        compiler_params=compiler_params,
    )(x_pred, z, w1_x, w1_z, b1, w2, b2, w3, b3)


# ---------------------------------------------------------------------------
# Reference + param init
# ---------------------------------------------------------------------------
def decoder_reference(x_pred, z, params):
    """Pure-JAX reference matching the original concat-based forward."""
    if z.ndim == 1:
        z = z[None, :]
    n = x_pred.shape[0]
    z_exp = jnp.broadcast_to(z, (n, z.shape[-1]))
    xz = jnp.concatenate([x_pred, z_exp], axis=-1)
    w1, b1, w2, b2, w3, b3 = params
    h1 = jax.nn.sigmoid(xz @ w1 + b1)
    h2 = jax.nn.sigmoid(h1 @ w2 + b2)
    return h2 @ w3 + b3


def init_decoder_params(key, input_dim, output_dim, hidden_dims):
    """Weights ~ N(0,1) (nn.init.normal_ default);
    biases ~ U(-1/sqrt(fan_in), 1/sqrt(fan_in)) like PyTorch Linear default."""
    params = []
    dims = [input_dim] + list(hidden_dims) + [output_dim]
    for i in range(len(dims) - 1):
        fan_in, fan_out = dims[i], dims[i + 1]
        key, kw, kb = jax.random.split(key, 3)
        w = jax.random.normal(kw, (fan_in, fan_out), dtype=jnp.float32)
        bound = 1.0 / (fan_in ** 0.5)
        b = jax.random.uniform(kb, (1, fan_out), dtype=jnp.float32,
                               minval=-bound, maxval=bound)
        params += [w, b]
    return tuple(params)


# ---------------------------------------------------------------------------
# Demo / self-check
# ---------------------------------------------------------------------------
if __name__ == "__main__":
    n, d_x, d_z = 16, 4, 8
    hidden_dims = [32, 32]
    output_dim = 8
    input_dim = d_x + d_z            # MLP input is concat([x_pred, z], -1)

    key = jax.random.PRNGKey(0)
    key, kx, kz, kz2 = jax.random.split(key, 4)
    x_pred = jax.random.normal(kx, (n, d_x), dtype=jnp.float32)
    z_single = jax.random.normal(kz, (d_z,), dtype=jnp.float32)      # 1-D z
    z_perrow = jax.random.normal(kz2, (n, d_z), dtype=jnp.float32)   # per-row z

    params = init_decoder_params(key, input_dim, output_dim, hidden_dims)

    # Path 1: shared z (folded into bias), row_tile=8 -> 2 grid steps.
    out1 = decoder_forward(x_pred, z_single, params, row_tile=8)
    jax.block_until_ready(out1)
    ref1 = decoder_reference(x_pred, z_single, params)
    assert out1.shape == (n, output_dim) and out1.dtype == jnp.float32
    assert jnp.allclose(out1, ref1, atol=1e-5, rtol=1e-5)

    # Path 2: per-row z (two dots in-kernel, no concat).
    out2 = decoder_forward(x_pred, z_perrow, params, row_tile=8)
    jax.block_until_ready(out2)
    ref2 = decoder_reference(x_pred, z_perrow, params)
    assert out2.shape == (n, output_dim) and out2.dtype == jnp.float32
    assert jnp.allclose(out2, ref2, atol=1e-5, rtol=1e-5)

    print("KERNEL_OK")
</pallas_src>

<mosaic_0001>
module attributes {stable_mosaic.version = 11 : i64} {
  func.func @decoder_kernel_folded_z(%arg0: i32, %arg1: memref<8x4xf32, #tpu.memory_space<vmem>>, %arg2: memref<4x32xf32, #tpu.memory_space<vmem>>, %arg3: memref<1x32xf32, #tpu.memory_space<vmem>>, %arg4: memref<32x32xf32, #tpu.memory_space<vmem>>, %arg5: memref<1x32xf32, #tpu.memory_space<vmem>>, %arg6: memref<32x8xf32, #tpu.memory_space<vmem>>, %arg7: memref<1x8xf32, #tpu.memory_space<vmem>>, %arg8: memref<8x8xf32, #tpu.memory_space<vmem>>) attributes {dimension_semantics = [#tpu.dimension_semantics<parallel>], iteration_bounds = array<i64: 2>, scalar_prefetch = 0 : i64, scratch_operands = 0 : i64, tpu.core_type = #tpu.core_type<tc>, window_params = [{transform_indices = @transform_0, window_bounds = array<i64: 8, 4>}, {pipeline_mode = #tpu.pipeline_mode<synchronous>, transform_indices = @transform_1, window_bounds = array<i64: 4, 32>}, {pipeline_mode = #tpu.pipeline_mode<synchronous>, transform_indices = @transform_2, window_bounds = array<i64: 1, 32>}, {pipeline_mode = #tpu.pipeline_mode<synchronous>, transform_indices = @transform_3, window_bounds = array<i64: 32, 32>}, {pipeline_mode = #tpu.pipeline_mode<synchronous>, transform_indices = @transform_4, window_bounds = array<i64: 1, 32>}, {pipeline_mode = #tpu.pipeline_mode<synchronous>, transform_indices = @transform_5, window_bounds = array<i64: 32, 8>}, {pipeline_mode = #tpu.pipeline_mode<synchronous>, transform_indices = @transform_6, window_bounds = array<i64: 1, 8>}, {transform_indices = @transform_7, window_bounds = array<i64: 8, 8>}]} {
    %c0 = arith.constant 0 : index
    %c0_0 = arith.constant 0 : index
    %0 = vector.load %arg1[%c0, %c0_0] : memref<8x4xf32, #tpu.memory_space<vmem>>, vector<8x4xf32>
    %c0_1 = arith.constant 0 : index
    %c0_2 = arith.constant 0 : index
    %1 = vector.load %arg2[%c0_1, %c0_2] : memref<4x32xf32, #tpu.memory_space<vmem>>, vector<4x32xf32>
    %cst = arith.constant dense<0.000000e+00> : vector<8x32xf32>
    %2 = tpu.matmul %0, %1, %cst {dimension_numbers = #tpu.dot_dimension_numbers<[1], [0], [0], [1], [0, 0, 1, 1], [], []>} : vector<8x4xf32>, vector<4x32xf32>, vector<8x32xf32> -> vector<8x32xf32>
    %c0_3 = arith.constant 0 : index
    %c0_4 = arith.constant 0 : index
    %3 = vector.load %arg3[%c0_3, %c0_4] : memref<1x32xf32, #tpu.memory_space<vmem>>, vector<1x32xf32>
    %4 = vector.broadcast %3 : vector<1x32xf32> to vector<8x32xf32>
    %5 = arith.addf %2, %4 : vector<8x32xf32>
    %6 = arith.negf %5 : vector<8x32xf32>
    %7 = math.exp %6 : vector<8x32xf32>
    %cst_5 = arith.constant 1.000000e+00 : f32
    %8 = vector.broadcast %cst_5 : f32 to vector<8x32xf32>
    %9 = arith.addf %8, %7 : vector<8x32xf32>
    %10 = arith.divf %8, %9 : vector<8x32xf32>
    %c0_6 = arith.constant 0 : index
    %c0_7 = arith.constant 0 : index
    %11 = vector.load %arg4[%c0_6, %c0_7] : memref<32x32xf32, #tpu.memory_space<vmem>>, vector<32x32xf32>
    %cst_8 = arith.constant dense<0.000000e+00> : vector<8x32xf32>
    %12 = tpu.matmul %10, %11, %cst_8 {dimension_numbers = #tpu.dot_dimension_numbers<[1], [0], [0], [1], [0, 0, 1, 1], [], []>} : vector<8x32xf32>, vector<32x32xf32>, vector<8x32xf32> -> vector<8x32xf32>
    %c0_9 = arith.constant 0 : index
    %c0_10 = arith.constant 0 : index
    %13 = vector.load %arg5[%c0_9, %c0_10] : memref<1x32xf32, #tpu.memory_space<vmem>>, vector<1x32xf32>
    %14 = vector.broadcast %13 : vector<1x32xf32> to vector<8x32xf32>
    %15 = arith.addf %12, %14 : vector<8x32xf32>
    %16 = arith.negf %15 : vector<8x32xf32>
    %17 = math.exp %16 : vector<8x32xf32>
    %cst_11 = arith.constant 1.000000e+00 : f32
    %18 = vector.broadcast %cst_11 : f32 to vector<8x32xf32>
    %19 = arith.addf %18, %17 : vector<8x32xf32>
    %20 = arith.divf %18, %19 : vector<8x32xf32>
    %c0_12 = arith.constant 0 : index
    %c0_13 = arith.constant 0 : index
    %21 = vector.load %arg6[%c0_12, %c0_13] : memref<32x8xf32, #tpu.memory_space<vmem>>, vector<32x8xf32>
    %cst_14 = arith.constant dense<0.000000e+00> : vector<8x8xf32>
    %22 = tpu.matmul %20, %21, %cst_14 {dimension_numbers = #tpu.dot_dimension_numbers<[1], [0], [0], [1], [0, 0, 1, 1], [], []>} : vector<8x32xf32>, vector<32x8xf32>, vector<8x8xf32> -> vector<8x8xf32>
    %c0_15 = arith.constant 0 : index
    %c0_16 = arith.constant 0 : index
    %23 = vector.load %arg7[%c0_15, %c0_16] : memref<1x8xf32, #tpu.memory_space<vmem>>, vector<1x8xf32>
    %24 = vector.broadcast %23 : vector<1x8xf32> to vector<8x8xf32>
    %25 = arith.addf %22, %24 : vector<8x8xf32>
    %c0_17 = arith.constant 0 : index
    %c0_18 = arith.constant 0 : index
    %26 = vector.load %arg8[%c0_17, %c0_18] : memref<8x8xf32, #tpu.memory_space<vmem>>, vector<8x8xf32>
    tpu.vector_store %arg8[%c0_17, %c0_18], %25 {strides = array<i32>} : memref<8x8xf32, #tpu.memory_space<vmem>>, vector<8x8xf32>,
    return
  }
  func.func @transform_0(%arg0: i32) -> (i32, i32) {
    %c0_i32 = arith.constant 0 : i32
    %c0_i32_0 = arith.constant 0 : i32
    return %arg0, %c0_i32 : i32, i32
  }
  func.func @transform_1(%arg0: i32) -> (i32, i32) {
    %c0_i32 = arith.constant 0 : i32
    %c0_i32_0 = arith.constant 0 : i32
    %c0_i32_1 = arith.constant 0 : i32
    return %c0_i32, %c0_i32_0 : i32, i32
  }
  func.func @transform_2(%arg0: i32) -> (i32, i32) {
    %c0_i32 = arith.constant 0 : i32
    %c0_i32_0 = arith.constant 0 : i32
    %c0_i32_1 = arith.constant 0 : i32
    return %c0_i32, %c0_i32_0 : i32, i32
  }
  func.func @transform_3(%arg0: i32) -> (i32, i32) {
    %c0_i32 = arith.constant 0 : i32
    %c0_i32_0 = arith.constant 0 : i32
    %c0_i32_1 = arith.constant 0 : i32
    return %c0_i32, %c0_i32_0 : i32, i32
  }
  func.func @transform_4(%arg0: i32) -> (i32, i32) {
    %c0_i32 = arith.constant 0 : i32
    %c0_i32_0 = arith.constant 0 : i32
    %c0_i32_1 = arith.constant 0 : i32
    return %c0_i32, %c0_i32_0 : i32, i32
  }
  func.func @transform_5(%arg0: i32) -> (i32, i32) {
    %c0_i32 = arith.constant 0 : i32
    %c0_i32_0 = arith.constant 0 : i32
    %c0_i32_1 = arith.constant 0 : i32
    return %c0_i32, %c0_i32_0 : i32, i32
  }
  func.func @transform_6(%arg0: i32) -> (i32, i32) {
    %c0_i32 = arith.constant 0 : i32
    %c0_i32_0 = arith.constant 0 : i32
    %c0_i32_1 = arith.constant 0 : i32
    return %c0_i32, %c0_i32_0 : i32, i32
  }
  func.func @transform_7(%arg0: i32) -> (i32, i32) {
    %c0_i32 = arith.constant 0 : i32
    %c0_i32_0 = arith.constant 0 : i32
    return %arg0, %c0_i32 : i32, i32
  }
}

</mosaic_0001>

<llo_original>
// kernel: tpu_custom_call.1
$region0: #{tpu_custom_call.1}
  #allocation0 [shape = 'u32[]', space=smem, size = 0x4, offset = 0x4, fixed_abs, tag = 'smem constant byte address 0x4 - core index']
  #allocation1 [shape = 'u32[72,128]{1,0:T(1,128)}', space=vmem, size = 0x9000, scoped, tag = 'internal scratch']
  %s0 = inlined_call_operand.vmem [shape: f32[16,4], index: 0, kind: input, shape index: {}]
  %s1 = inlined_call_operand.vmem [shape: f32[4,32], index: 1, kind: input, shape index: {}]
  %s2 = inlined_call_operand.vmem [shape: f32[1,32], index: 2, kind: input, shape index: {}]
  %s3 = inlined_call_operand.vmem [shape: f32[32,32], index: 3, kind: input, shape index: {}]
  %s4 = inlined_call_operand.vmem [shape: f32[1,32], index: 4, kind: input, shape index: {}]
  %s5 = inlined_call_operand.vmem [shape: f32[32,8], index: 5, kind: input, shape index: {}]
  %s6 = inlined_call_operand.vmem [shape: f32[1,8], index: 6, kind: input, shape index: {}]
  %s7 = inlined_call_operand.vmem [shape: f32[16,8], index: 7, kind: output, shape index: {}]
  %s8 = sld [smem:[#allocation0]]
  $region61: #{tpu_custom_call.1} parent=0
    _
  %s10 = ssub.s32 1, %s8
  %s11 = scalar_select 0, %s10, %s8
  loop: start=0, step=1, limit=4
  $region2: #{tpu_custom_call.1} parent=0 // loop_pre_header
    _
  $region3: #{tpu_custom_call.1} parent=0 // loop_header
    %s13 = sphi 0, %s17
    %p14 = scmp.ge.s32.totalorder %s13, 4
    %s23 = sphi 0, %s25
    %s26 = sphi 0, %s23
    %s27 = sphi 0, %s26
    %s43 = sphi 0, %s27
    %s47 = sphi 0, %s47
    %s49 = sphi 0, %s47
    %s50 = sphi 0, %s49
    %s64 = sphi 0, %s50
    %s68 = sphi 0, %s68
    %s70 = sphi 0, %s68
    %s71 = sphi 0, %s70
    %s85 = sphi 0, %s71
    %s89 = sphi 0, %s89
    %s91 = sphi 0, %s89
    %s92 = sphi 0, %s91
    %s106 = sphi 0, %s92
    %s110 = sphi 0, %s110
    %s112 = sphi 0, %s110
    %s113 = sphi 0, %s112
    %s127 = sphi 0, %s113
    %s131 = sphi 0, %s131
    %s133 = sphi 0, %s131
    %s134 = sphi 0, %s133
    %s148 = sphi 0, %s134
    %s152 = sphi 0, %s152
    %s154 = sphi 0, %s152
    %s155 = sphi 0, %s154
    %s169 = sphi 0, %s155
    %s175 = sphi 0, %s177
    %s178 = sphi 0, %s175
    %s179 = sphi 0, %s178
    %s195 = sphi 0, %s179
  $region4: #{tpu_custom_call.1} parent=0 // loop_header_branch
    %16 = sbr.rel (%p14) target = $region8
  $region5: #{tpu_custom_call.1} parent=0 // loop_body
    %s18 = ssub.s32 %s13, 1
    %s19 = ssub.s32 %s13, 2
    %s20 = sadd.s32 %s13, 1
    %s21 = ssub.s32 %s13, %s20
    %p22 = scmp.eq.s32.totalorder %s21, 0
    %s24 = sadd.s32 %s23, 1
    %s25 = scalar_select %p22, %s23, %s24
    %p28 = pneg %p22
    %p29 = scmp.eq.s32.totalorder %s13, 1
    %p30 = por %p28, %p29
    %p31 = scmp.ne.s32.totalorder %s23, %s26
    %p32 = scmp.eq.s32.totalorder %s13, 0
    %p33 = por %p31, %p32
    %p34 = scmp.ne.s32.totalorder %s23, %s26
    %p35 = scmp.eq.s32.totalorder %s18, 1
    %p36 = por %p34, %p35
    %p37 = scmp.ne.s32.totalorder %s26, %s27
    %p38 = scmp.eq.s32.totalorder %s18, 0
    %p39 = por %p37, %p38
    %p40 = scmp.ne.s32.totalorder %s26, %s27
    %p41 = scmp.eq.s32.totalorder %s19, 1
    %p42 = por %p40, %p41
    %p44 = scmp.ne.s32.totalorder %s27, %s43
    %p45 = scmp.eq.s32.totalorder %s19, 0
    %p46 = por %p44, %p45
    %s48 = sadd.s32 %s47, 1
    %p51 = scmp.eq.s32.totalorder %s13, 1
    %p52 = scmp.ne.s32.totalorder %s47, %s49
    %p53 = scmp.eq.s32.totalorder %s13, 0
    %p54 = por %p52, %p53
    %p55 = scmp.ne.s32.totalorder %s47, %s49
    %p56 = scmp.eq.s32.totalorder %s18, 1
    %p57 = por %p55, %p56
    %p58 = scmp.ne.s32.totalorder %s49, %s50
    %p59 = scmp.eq.s32.totalorder %s18, 0
    %p60 = por %p58, %p59
    %p61 = scmp.ne.s32.totalorder %s49, %s50
    %p62 = scmp.eq.s32.totalorder %s19, 1
    %p63 = por %p61, %p62
    %p65 = scmp.ne.s32.totalorder %s50, %s64
    %p66 = scmp.eq.s32.totalorder %s19, 0
    %p67 = por %p65, %p66
    %s69 = sadd.s32 %s68, 1
    %p72 = scmp.eq.s32.totalorder %s13, 1
    %p73 = scmp.ne.s32.totalorder %s68, %s70
    %p74 = scmp.eq.s32.totalorder %s13, 0
    %p75 = por %p73, %p74
    %p76 = scmp.ne.s32.totalorder %s68, %s70
    %p77 = scmp.eq.s32.totalorder %s18, 1
    %p78 = por %p76, %p77
    %p79 = scmp.ne.s32.totalorder %s70, %s71
    %p80 = scmp.eq.s32.totalorder %s18, 0
    %p81 = por %p79, %p80
    %p82 = scmp.ne.s32.totalorder %s70, %s71
    %p83 = scmp.eq.s32.totalorder %s19, 1
    %p84 = por %p82, %p83
    %p86 = scmp.ne.s32.totalorder %s71, %s85
    %p87 = scmp.eq.s32.totalorder %s19, 0
    %p88 = por %p86, %p87
    %s90 = sadd.s32 %s89, 1
    %p93 = scmp.eq.s32.totalorder %s13, 1
    %p94 = scmp.ne.s32.totalorder %s89, %s91
    %p95 = scmp.eq.s32.totalorder %s13, 0
    %p96 = por %p94, %p95
    %p97 = scmp.ne.s32.totalorder %s89, %s91
    %p98 = scmp.eq.s32.totalorder %s18, 1
    %p99 = por %p97, %p98
    %p100 = scmp.ne.s32.totalorder %s91, %s92
    %p101 = scmp.eq.s32.totalorder %s18, 0
    %p102 = por %p100, %p101
    %p103 = scmp.ne.s32.totalorder %s91, %s92
    %p104 = scmp.eq.s32.totalorder %s19, 1
    %p105 = por %p103, %p104
    %p107 = scmp.ne.s32.totalorder %s92, %s106
    %p108 = scmp.eq.s32.totalorder %s19, 0
    %p109 = por %p107, %p108
    %s111 = sadd.s32 %s110, 1
    %p114 = scmp.eq.s32.totalorder %s13, 1
    %p115 = scmp.ne.s32.totalorder %s110, %s112
    %p116 = scmp.eq.s32.totalorder %s13, 0
    %p117 = por %p115, %p116
    %p118 = scmp.ne.s32.totalorder %s110, %s112
    %p119 = scmp.eq.s32.totalorder %s18, 1
    %p120 = por %p118, %p119
    %p121 = scmp.ne.s32.totalorder %s112, %s113
    %p122 = scmp.eq.s32.totalorder %s18, 0
    %p123 = por %p121, %p122
    %p124 = scmp.ne.s32.totalorder %s112, %s113
    %p125 = scmp.eq.s32.totalorder %s19, 1
    %p126 = por %p124, %p125
    %p128 = scmp.ne.s32.totalorder %s113, %s127
    %p129 = scmp.eq.s32.totalorder %s19, 0
    %p130 = por %p128, %p129
    %s132 = sadd.s32 %s131, 1
    %p135 = scmp.eq.s32.totalorder %s13, 1
    %p136 = scmp.ne.s32.totalorder %s131, %s133
    %p137 = scmp.eq.s32.totalorder %s13, 0
    %p138 = por %p136, %p137
    %p139 = scmp.ne.s32.totalorder %s131, %s133
    %p140 = scmp.eq.s32.totalorder %s18, 1
    %p141 = por %p139, %p140
    %p142 = scmp.ne.s32.totalorder %s133, %s134
    %p143 = scmp.eq.s32.totalorder %s18, 0
    %p144 = por %p142, %p143
    %p145 = scmp.ne.s32.totalorder %s133, %s134
    %p146 = scmp.eq.s32.totalorder %s19, 1
    %p147 = por %p145, %p146
    %p149 = scmp.ne.s32.totalorder %s134, %s148
    %p150 = scmp.eq.s32.totalorder %s19, 0
    %p151 = por %p149, %p150
    %s153 = sadd.s32 %s152, 1
    %p156 = scmp.eq.s32.totalorder %s13, 1
    %p157 = scmp.ne.s32.totalorder %s152, %s154
    %p158 = scmp.eq.s32.totalorder %s13, 0
    %p159 = por %p157, %p158
    %p160 = scmp.ne.s32.totalorder %s152, %s154
    %p161 = scmp.eq.s32.totalorder %s18, 1
    %p162 = por %p160, %p161
    %p163 = scmp.ne.s32.totalorder %s154, %s155
    %p164 = scmp.eq.s32.totalorder %s18, 0
    %p165 = por %p163, %p164
    %p166 = scmp.ne.s32.totalorder %s154, %s155
    %p167 = scmp.eq.s32.totalorder %s19, 1
    %p168 = por %p166, %p167
    %p170 = scmp.ne.s32.totalorder %s155, %s169
    %p171 = scmp.eq.s32.totalorder %s19, 0
    %p172 = por %p170, %p171
    %s173 = ssub.s32 %s13, %s20
    %p174 = scmp.eq.s32.totalorder %s173, 0
    %s176 = sadd.s32 %s175, 1
    %s177 = scalar_select %p174, %s175, %s176
    %p180 = pneg %p174
    %p181 = scmp.eq.s32.totalorder %s13, 1
    %p182 = por %p180, %p181
    %p183 = scmp.ne.s32.totalorder %s175, %s178
    %p184 = scmp.eq.s32.totalorder %s13, 0
    %p185 = por %p183, %p184
    %p186 = scmp.ne.s32.totalorder %s175, %s178
    %p187 = scmp.eq.s32.totalorder %s18, 1
    %p188 = por %p186, %p187
    %p189 = scmp.ne.s32.totalorder %s178, %s179
    %p190 = scmp.eq.s32.totalorder %s18, 0
    %p191 = por %p189, %p190
    %p192 = scmp.ne.s32.totalorder %s178, %s179
    %p193 = scmp.eq.s32.totalorder %s19, 1
    %p194 = por %p192, %p193
    %p196 = scmp.ne.s32.totalorder %s179, %s195
    %p197 = scmp.eq.s32.totalorder %s19, 0
    %p198 = por %p196, %p197
    %p199 = scmp.le.s32.totalorder 1, %s13
    %p200 = scmp.lt.s32.totalorder %s13, 3
    %p201 = pnand %p199, %p200
    %p202 = pneg %p201
    // Predicated region
    $region9: #{tpu_custom_call.1} parent=5 // pred_check
      _
    $region10: #{tpu_custom_call.1} parent=5 // pred_check_branch
      %204 = sbr.rel (%p201) target = $region12
    $region11: #{tpu_custom_call.1} parent=5 // pred_region
      %s205 = ssub.s32 %s13, 1
      // Predicated region
      $region13: #{tpu_custom_call.1} parent=11 // pred_check
        %p206 = pneg %p60
      $region14: #{tpu_custom_call.1} parent=11 // pred_check_branch
        %208 = sbr.rel (%p206) target = $region16
      $region15: #{tpu_custom_call.1} parent=11 // pred_region
        _
      $region16: #{tpu_custom_call.1} parent=11 // pred_fallthru
        _
      // Predicated region
      $region17: #{tpu_custom_call.1} parent=11 // pred_check
        %p209 = pneg %p81
      $region18: #{tpu_custom_call.1} parent=11 // pred_check_branch
        %211 = sbr.rel (%p209) target = $region20
      $region19: #{tpu_custom_call.1} parent=11 // pred_region
        _
      $region20: #{tpu_custom_call.1} parent=11 // pred_fallthru
        _
      // Predicated region
      $region21: #{tpu_custom_call.1} parent=11 // pred_check
        %p212 = pneg %p102
      $region22: #{tpu_custom_call.1} parent=11 // pred_check_branch
        %214 = sbr.rel (%p212) target = $region24
      $region23: #{tpu_custom_call.1} parent=11 // pred_region
        _
      $region24: #{tpu_custom_call.1} parent=11 // pred_fallthru
        _
      // Predicated region
      $region25: #{tpu_custom_call.1} parent=11 // pred_check
        %p215 = pneg %p123
      $region26: #{tpu_custom_call.1} parent=11 // pred_check_branch
        %217 = sbr.rel (%p215) target = $region28
      $region27: #{tpu_custom_call.1} parent=11 // pred_region
        _
      $region28: #{tpu_custom_call.1} parent=11 // pred_fallthru
        _
      // Predicated region
      $region29: #{tpu_custom_call.1} parent=11 // pred_check
        %p218 = pneg %p144
      $region30: #{tpu_custom_call.1} parent=11 // pred_check_branch
        %220 = sbr.rel (%p218) target = $region32
      $region31: #{tpu_custom_call.1} parent=11 // pred_region
        _
      $region32: #{tpu_custom_call.1} parent=11 // pred_fallthru
        _
      // Predicated region
      $region33: #{tpu_custom_call.1} parent=11 // pred_check
        %p221 = pneg %p165
      $region34: #{tpu_custom_call.1} parent=11 // pred_check_branch
        %223 = sbr.rel (%p221) target = $region36
      $region35: #{tpu_custom_call.1} parent=11 // pred_region
        _
      $region36: #{tpu_custom_call.1} parent=11 // pred_fallthru
        _
    $region12: #{tpu_custom_call.1} parent=5 // pred_fallthru
      _
    %p224 = scmp.lt.s32.totalorder %s13, 2
    // Predicated region
    $region37: #{tpu_custom_call.1} parent=5 // pred_check
      %p225 = pneg %p224
    $region38: #{tpu_custom_call.1} parent=5 // pred_check_branch
      %227 = sbr.rel (%p225) target = $region40
    $region39: #{tpu_custom_call.1} parent=5 // pred_region
      // Predicated region
      $region41: #{tpu_custom_call.1} parent=39 // pred_check
        %p228 = pneg %p33
      $region42: #{tpu_custom_call.1} parent=39 // pred_check_branch
        %230 = sbr.rel (%p228) target = $region44
      $region43: #{tpu_custom_call.1} parent=39 // pred_region
        %p231 = scmp.lt.s32.totalorder %s13, 1
        %s232 = scalar_select %p231, %s13, 1
        %s233 = smul.addr %s232, 8
        %s234 = scalar_lea.vmem %s0, %s233
      $region44: #{tpu_custom_call.1} parent=39 // pred_fallthru
        _
    $region40: #{tpu_custom_call.1} parent=5 // pred_fallthru
      _
    %p235 = scmp.le.s32.totalorder 1, %s13
    %p236 = scmp.lt.s32.totalorder %s13, 3
    %p237 = pnand %p235, %p236
    %p238 = pneg %p237
    // Predicated region
    $region45: #{tpu_custom_call.1} parent=5 // pred_check
      _
    $region46: #{tpu_custom_call.1} parent=5 // pred_check_branch
      %240 = sbr.rel (%p237) target = $region48
    $region47: #{tpu_custom_call.1} parent=5 // pred_region
      %s241 = ssub.s32 %s13, 1
      %p242 = scmp.lt.s32.totalorder %s18, 1
      %s243 = scalar_select %p242, %s18, 1
      %s244 = smul.addr %s243, 8
      %s245 = scalar_lea.vmem %s0, %s244
      %p246 = pneg %p39
      %p247 = pneg %p36
      %p248 = pneg %p60
      %p249 = pneg %p57
      %p250 = pneg %p81
      %p251 = pneg %p78
      %p252 = pneg %p102
      %p253 = pneg %p99
      %p254 = pneg %p123
      %p255 = pneg %p120
      %p256 = pneg %p144
      %p257 = pneg %p141
      %p258 = pneg %p165
      %p259 = pneg %p162
      %p260 = pneg %p191
      %p261 = pneg %p188
      %p262 = scmp.lt.s32.totalorder %s18, 1
      %s263 = scalar_select %p262, %s18, 1
      %s264 = smul.addr %s263, 8
      %s265 = scalar_lea.vmem %s7, %s264
      %p266 = scmp.lt.s32.totalorder %s18, 1
      %s267 = scalar_select %p266, %s18, 1
      %s268 = smul.addr %s267, 8
      %s269 = scalar_lea.vmem %s0, %s268
      %p270 = scmp.lt.s32.totalorder %s18, 1
      %s271 = scalar_select %p270, %s18, 1
      %s272 = smul.addr %s271, 8
      %s273 = scalar_lea.vmem %s7, %s272
      %v274 = vld [vmem:[%s269] sm:$0xff]
      %v275 = vld [vmem:[%s1] sm:$0xf]
      %v276 = vld [vmem:[%s2] sm:$0x1]
      %v278 = vperm.slane %v276, 0
      %vm280 = vcmask 31744
      %v282 = vsel %vm280, %v274, 0
      %vm284 = vcmask 1043456
      %v286 = vsel %vm284, %v275, 0
      %288 = vmatpush.msra.mxu0 0.0
      %289 = vmatpush.msra.mxu0 0.0
      %290 = vmatpush.msra.mxu0 0.0
      %291 = vmatpush.msra.mxu0 0.0
      %292 = vmatpush.msra.mxu0 0.0
      %293 = vmatpush.msra.mxu0 0.0
      %294 = vmatpush.msra.mxu0 0.0
      %295 = vmatpush.msra.mxu0 0.0
      %296 = vmatpush.msra.mxu0 0.0
      %297 = vmatpush.msra.mxu0 0.0
      %298 = vmatpush.msra.mxu0 0.0
      %299 = vmatpush.msra.mxu0 0.0
      %300 = vmatpush.msra.mxu0 0.0
      %301 = vmatpush.msra.mxu0 0.0
      %302 = vmatpush.msra.mxu0 0.0
      %303 = vmatpush.msra.mxu0 %v286
      %304 = vmatmul.f32.gmra.mxu0 %v282
      %v305 = vpop.f32.mrf.mxu0
      %v306 = vadd.f32 %v278, %v305
      %307 = vdwg.mxu0
      %v308 = vxor.u32 %v306, 2147483648
      %v309 = vmul.f32 %v308, 1.442695
      %v310 = vpow.pop %v309
      %v311 = vadd.f32 %v310, 1.0
      %v312 = vrcp.pop %v311
      %v313 = vmul.f32 %v311, %v312
      %v314 = vsub.f32 1.0, %v313
      %v315 = vmul.f32 %v312, %v314
      %v316 = vadd.f32 %v312, %v315
      %vm317 = vweird.f32 %v311
      %vm318 = vweird.f32 %v312
      %vm319 = vmor %vm317, %vm318
      %v320 = vsel %vm319, %v312, %v316
      %v321 = vand.u32 2147483647, %v311
      %vm322 = vcmp.eq.f32.partialorder %v321, 8.507059e+37
      %v323 = vand.u32 %v311, 2147483648
      %v324 = vor.u32 1.1754944e-38, %v323
      %v325 = vsel %vm322, %v324, %v320
      %v326 = vmul.f32 1.0, %v325
      %v327 = vld [vmem:[%s3] sm:$0xff]
      %v328 = vld [vmem:[%s3 + $0x8] sm:$0xff]
      %v329 = vld [vmem:[%s3 + $0x10] sm:$0xff]
      %v330 = vld [vmem:[%s3 + $0x18] sm:$0xff]
      %v331 = vld [vmem:[%s4] sm:$0x1]
      %v333 = vperm.slane %v331, 0
      %vm335 = vcmask 261120
      %v337 = vsel %vm335, %v326, 0
      %339 = vmatpush.msra.mxu0 0.0
      %340 = vmatpush.msra.mxu0 0.0
      %341 = vmatpush.msra.mxu0 0.0
      %342 = vmatpush.msra.mxu0 0.0
      %343 = vmatpush.msra.mxu0 0.0
      %344 = vmatpush.msra.mxu0 0.0
      %345 = vmatpush.msra.mxu0 0.0
      %346 = vmatpush.msra.mxu0 0.0
      %347 = vmatpush.msra.mxu0 0.0
      %348 = vmatpush.msra.mxu0 0.0
      %349 = vmatpush.msra.mxu0 0.0
      %350 = vmatpush.msra.mxu0 0.0
      %351 = vmatpush.msra.mxu0 %v330
      %352 = vmatpush.msra.mxu0 %v329
      %353 = vmatpush.msra.mxu0 %v328
      %354 = vmatpush.msra.mxu0 %v327
      %355 = vmatmul.f32.gmra.mxu0 %v337
      %v356 = vpop.f32.mrf.mxu0
      %v357 = vadd.f32 %v333, %v356
      %358 = vdwg.mxu0
      %v359 = vxor.u32 %v357, 2147483648
      %v360 = vmul.f32 %v359, 1.442695
      %v361 = vpow.pop %v360
      %v362 = vadd.f32 %v361, 1.0
      %v363 = vrcp.pop %v362
      %v364 = vmul.f32 %v362, %v363
      %v365 = vsub.f32 1.0, %v364
      %v366 = vmul.f32 %v363, %v365
      %v367 = vadd.f32 %v363, %v366
      %vm368 = vweird.f32 %v362
      %vm369 = vweird.f32 %v363
      %vm370 = vmor %vm368, %vm369
      %v371 = vsel %vm370, %v363, %v367
      %v372 = vand.u32 2147483647, %v362
      %vm373 = vcmp.eq.f32.partialorder %v372, 8.507059e+37
      %v374 = vand.u32 %v362, 2147483648
      %v375 = vor.u32 1.1754944e-38, %v374
      %v376 = vsel %vm373, %v375, %v371
      %v377 = vmul.f32 1.0, %v376
      %v378 = vld [vmem:[%s5] sm:$0xff]
      %v379 = vld [vmem:[%s5 + $0x8] sm:$0xff]
      %v380 = vld [vmem:[%s5 + $0x10] sm:$0xff]
      %v381 = vld [vmem:[%s5 + $0x18] sm:$0xff]
      %v382 = vld [vmem:[%s6] sm:$0x1]
      %v384 = vperm.slane %v382, 0
      %v387 = vsel %vm335, %v377, 0
      %389 = vmatpush.msra.mxu0 0.0
      %390 = vmatpush.msra.mxu0 0.0
      %391 = vmatpush.msra.mxu0 0.0
      %392 = vmatpush.msra.mxu0 0.0
      %393 = vmatpush.msra.mxu0 0.0
      %394 = vmatpush.msra.mxu0 0.0
      %395 = vmatpush.msra.mxu0 0.0
      %396 = vmatpush.msra.mxu0 0.0
      %397 = vmatpush.msra.mxu0 0.0
      %398 = vmatpush.msra.mxu0 0.0
      %399 = vmatpush.msra.mxu0 0.0
      %400 = vmatpush.msra.mxu0 0.0
      %401 = vmatpush.msra.mxu0 %v381
      %402 = vmatpush.msra.mxu0 %v380
      %403 = vmatpush.msra.mxu0 %v379
      %404 = vmatpush.msra.mxu0 %v378
      %405 = vmatmul.f32.gmra.mxu0 %v387
      %v406 = vpop.f32.mrf.mxu0
      %v407 = vadd.f32 %v384, %v406
      %408 = vdwg.mxu0
      %vm409 = vcmask 64512
      %410 = vst.msk [vmem:[%s273] sm:$0xff] %vm409, %v407
      %p411 = scmp.lt.s32.totalorder %s18, 1
      %s412 = scalar_select %p411, %s18, 1
      %s413 = smul.addr %s412, 8
      %s414 = scalar_lea.vmem %s7, %s413
      // Predicated region
      $region49: #{tpu_custom_call.1} parent=47 // pred_check
        %p415 = pneg %p188
      $region50: #{tpu_custom_call.1} parent=47 // pred_check_branch
        %417 = sbr.rel (%p415) target = $region52
      $region51: #{tpu_custom_call.1} parent=47 // pred_region
        _
      $region52: #{tpu_custom_call.1} parent=47 // pred_fallthru
        _
    $region48: #{tpu_custom_call.1} parent=5 // pred_fallthru
      _
    %p418 = scmp.le.s32.totalorder 2, %s13
    // Predicated region
    $region53: #{tpu_custom_call.1} parent=5 // pred_check
      %p419 = pneg %p418
    $region54: #{tpu_custom_call.1} parent=5 // pred_check_branch
      %421 = sbr.rel (%p419) target = $region56
    $region55: #{tpu_custom_call.1} parent=5 // pred_region
      %s422 = ssub.s32 %s13, 2
      // Predicated region
      $region57: #{tpu_custom_call.1} parent=55 // pred_check
        %p423 = pneg %p194
      $region58: #{tpu_custom_call.1} parent=55 // pred_check_branch
        %425 = sbr.rel (%p423) target = $region60
      $region59: #{tpu_custom_call.1} parent=55 // pred_region
        %p426 = scmp.lt.s32.totalorder %s19, 1
        %s427 = scalar_select %p426, %s19, 1
        %s428 = smul.addr %s427, 8
        %s429 = scalar_lea.vmem %s7, %s428
      $region60: #{tpu_custom_call.1} parent=55 // pred_fallthru
        _
    $region56: #{tpu_custom_call.1} parent=5 // pred_fallthru
      _
  $region6: #{tpu_custom_call.1} parent=0 // loop_footer
    %s17 = sadd.s32 1, %s13
  $region7: #{tpu_custom_call.1} parent=0 // loop_footer_branch
    %12 = sbr.rel target = $region3
  $region8: #{tpu_custom_call.1} parent=0 // loop_exit
    _

</llo_original>
